<compile_context>
chip_gen: v5e
topology: v5e:2x2
jax: 0.10.0
libtpu: 0.0.40
codegen_flags: <defaults>
</compile_context>

<pallas_src>
import jax
import jax.numpy as jnp
from jax.experimental import pallas as pl
from jax.experimental.pallas import tpu as pltpu

# ---- model config (MLP backbone actor) -------------------------------------
OBS_DIM = 16          # backbone input features
HIDDEN_DIM = 32       # backbone hidden width
LATENT_DIM = 32       # backbone.output_dim
ACTION_DIM = 8        # Actor.last out_features
MAX_ACTION = 1.0      # Actor._max (module default)

LANE = 128                      # TPU lane width; all padded feature dims
W_ROWS = OBS_DIM + 2 * LANE     # packed weight buffer rows: [w1 | w2 | w_last]
TILE_B_DEFAULT = 512            # batch rows per grid step


def _round_up(x, m):
    return ((x + m - 1) // m) * m


def _actor_kernel(obs_ref, wp_ref, bp_ref, out_ref):
    """Fused MLP backbone + last Linear + max_action * tanh.

    obs_ref : (TILE_B, OBS_DIM)  bf16
    wp_ref  : (W_ROWS, LANE)     bf16  -- zero-padded [w1 ; w2 ; w_last]
    bp_ref  : (8, LANE)          f32   -- rows 0/1/2 = b1 / b2 / b_last (padded)
    out_ref : (TILE_B, LANE)     f32   -- lane-dense; actions in cols [:ACTION_DIM]
    """
    x = obs_ref[...]                                        # bf16 (TILE_B, 16)

    # Static, 16-row-aligned slices of the packed bf16 weight slab (views).
    w1 = wp_ref[0:OBS_DIM, :]                               # (16, 128)
    w2 = wp_ref[OBS_DIM:OBS_DIM + LANE, :]                  # (128, 128)
    wl = wp_ref[OBS_DIM + LANE:OBS_DIM + 2 * LANE, :]       # (128, 128)

    b_all = bp_ref[...]                                     # f32 (8, 128)
    b1 = b_all[0:1, :]
    b2 = b_all[1:2, :]
    bl = b_all[2:3, :]

    # backbone layer 1: Linear + ReLU (bf16 MXU operands, f32 accumulate/epilogue)
    h = jnp.dot(x, w1, preferred_element_type=jnp.float32) + b1
    h = jnp.maximum(h, 0.0)

    # backbone layer 2: Linear + ReLU
    h = jnp.dot(h.astype(jnp.bfloat16), w2,
                preferred_element_type=jnp.float32) + b2
    h = jnp.maximum(h, 0.0)

    # Actor.last: Linear, then actions = max_action * tanh(logits)
    logits = jnp.dot(h.astype(jnp.bfloat16), wl,
                     preferred_element_type=jnp.float32) + bl
    out_ref[...] = MAX_ACTION * jnp.tanh(logits)


def pack_params(params):
    """Pad weights to 128 lanes, concatenate into one bf16 slab + one f32 bias slab."""
    w1, b1, w2, b2, wl, bl = params
    w1p = jnp.zeros((OBS_DIM, LANE), jnp.float32).at[:, :HIDDEN_DIM].set(w1)
    w2p = jnp.zeros((LANE, LANE), jnp.float32).at[:HIDDEN_DIM, :LATENT_DIM].set(w2)
    wlp = jnp.zeros((LANE, LANE), jnp.float32).at[:LATENT_DIM, :ACTION_DIM].set(wl)
    w_packed = jnp.concatenate([w1p, w2p, wlp], axis=0).astype(jnp.bfloat16)

    b_packed = jnp.zeros((8, LANE), jnp.float32)
    b_packed = b_packed.at[0, :HIDDEN_DIM].set(b1.reshape(-1))
    b_packed = b_packed.at[1, :LATENT_DIM].set(b2.reshape(-1))
    b_packed = b_packed.at[2, :ACTION_DIM].set(bl.reshape(-1))
    return w_packed, b_packed


def actor_forward(obs, packed_params, *, tile_b=TILE_B_DEFAULT):
    """obs: (batch, OBS_DIM) float32 -> actions: (batch, ACTION_DIM) float32."""
    w_packed, b_packed = packed_params
    batch = obs.shape[0]

    tb = min(tile_b, _round_up(batch, 8))       # 8-aligned batch tile
    padded = _round_up(batch, tb)
    if padded != batch:
        obs = jnp.pad(obs, ((0, padded - batch), (0, 0)))
    obs = obs.astype(jnp.bfloat16)              # halve obs HBM traffic (MXU is bf16)

    out = pl.pallas_call(
        _actor_kernel,
        out_shape=jax.ShapeDtypeStruct((padded, LANE), jnp.float32),
        grid_spec=pltpu.PrefetchScalarGridSpec(
            num_scalar_prefetch=0,
            grid=(padded // tb,),
            in_specs=[
                # batch-tiled obs (pipelined / double-buffered)
                pl.BlockSpec((tb, OBS_DIM), lambda i: (i, 0)),
                # weights + biases: constant block index -> VMEM-resident, one DMA
                pl.BlockSpec((W_ROWS, LANE), lambda i: (0, 0)),
                pl.BlockSpec((8, LANE), lambda i: (0, 0)),
            ],
            out_specs=pl.BlockSpec((tb, LANE), lambda i: (i, 0)),
        ),
        compiler_params=pltpu.CompilerParams(
            dimension_semantics=("parallel",)),   # v7x: shard batch over both TCs
    )(obs, w_packed, b_packed)

    return out[:batch, :ACTION_DIM]


def init_params(key):
    """PyTorch-Linear-style init: U(-1/sqrt(fan_in), 1/sqrt(fan_in)); W is (in, out)."""
    def linear(k, fan_in, fan_out):
        kw, kb = jax.random.split(k)
        bound = 1.0 / jnp.sqrt(fan_in)
        w = jax.random.uniform(kw, (fan_in, fan_out), jnp.float32, -bound, bound)
        b = jax.random.uniform(kb, (1, fan_out), jnp.float32, -bound, bound)
        return w, b

    k1, k2, k3 = jax.random.split(key, 3)
    w1, b1 = linear(k1, OBS_DIM, HIDDEN_DIM)
    w2, b2 = linear(k2, HIDDEN_DIM, LATENT_DIM)
    wl, bl = linear(k3, LATENT_DIM, ACTION_DIM)
    return (w1, b1, w2, b2, wl, bl)


def actor_ref(obs, params):
    """Pure-JAX reference mirroring the kernel's bf16-operand / f32-accumulate math."""
    w1, b1, w2, b2, wl, bl = params
    bf = lambda a: a.astype(jnp.bfloat16).astype(jnp.float32)
    hp = jax.lax.Precision.HIGHEST
    h = jnp.maximum(jnp.dot(bf(obs), bf(w1), precision=hp) + b1, 0.0)
    h = jnp.maximum(jnp.dot(bf(h), bf(w2), precision=hp) + b2, 0.0)
    return MAX_ACTION * jnp.tanh(jnp.dot(bf(h), bf(wl), precision=hp) + bl)


if __name__ == "__main__":
    key = jax.random.PRNGKey(0)
    k_obs, k_params = jax.random.split(key)

    batch = 1000   # deliberately not a tile multiple: exercises padding + 2-step grid
    obs = jax.random.normal(k_obs, (batch, OBS_DIM), dtype=jnp.float32)
    params = init_params(k_params)
    packed = pack_params(params)

    actions = actor_forward(obs, packed)
    actions = jax.block_until_ready(actions)

    ref = actor_ref(obs, params)
    assert actions.shape == (batch, ACTION_DIM)
    assert bool(jnp.all(jnp.isfinite(actions)))
    assert bool(jnp.all(jnp.abs(actions) <= MAX_ACTION + 1e-6))
    max_err = jnp.max(jnp.abs(actions - ref))
    assert max_err < 2e-2, f"max abs err {max_err}"

    print("KERNEL_OK")
</pallas_src>

<mosaic_0001>
module attributes {stable_mosaic.version = 11 : i64} {
  func.func @_actor_kernel(%arg0: i32, %arg1: memref<512x16xbf16, #tpu.memory_space<vmem>>, %arg2: memref<272x128xbf16, #tpu.memory_space<vmem>>, %arg3: memref<8x128xf32, #tpu.memory_space<vmem>>, %arg4: memref<512x128xf32, #tpu.memory_space<vmem>>) attributes {dimension_semantics = [#tpu.dimension_semantics<parallel>], iteration_bounds = array<i64: 2>, scalar_prefetch = 0 : i64, scratch_operands = 0 : i64, tpu.core_type = #tpu.core_type<tc>, window_params = [{transform_indices = @transform_0, window_bounds = array<i64: 512, 16>}, {pipeline_mode = #tpu.pipeline_mode<synchronous>, transform_indices = @transform_1, window_bounds = array<i64: 272, 128>}, {pipeline_mode = #tpu.pipeline_mode<synchronous>, transform_indices = @transform_2, window_bounds = array<i64: 8, 128>}, {transform_indices = @transform_3, window_bounds = array<i64: 512, 128>}]} {
    %c0 = arith.constant 0 : index
    %c0_0 = arith.constant 0 : index
    %0 = vector.load %arg1[%c0, %c0_0] : memref<512x16xbf16, #tpu.memory_space<vmem>>, vector<512x16xbf16>
    %c0_1 = arith.constant 0 : index
    %c0_2 = arith.constant 0 : index
    %1 = vector.load %arg2[%c0_1, %c0_2] : memref<272x128xbf16, #tpu.memory_space<vmem>>, vector<16x128xbf16>
    %c16 = arith.constant 16 : index
    %c0_3 = arith.constant 0 : index
    %2 = vector.load %arg2[%c16, %c0_3] : memref<272x128xbf16, #tpu.memory_space<vmem>>, vector<128x128xbf16>
    %c144 = arith.constant 144 : index
    %c0_4 = arith.constant 0 : index
    %3 = vector.load %arg2[%c144, %c0_4] : memref<272x128xbf16, #tpu.memory_space<vmem>>, vector<128x128xbf16>
    %c0_5 = arith.constant 0 : index
    %c0_6 = arith.constant 0 : index
    %4 = vector.load %arg3[%c0_5, %c0_6] : memref<8x128xf32, #tpu.memory_space<vmem>>, vector<8x128xf32>
    %5 = vector.extract_strided_slice %4 {offsets = [0, 0], sizes = [1, 128], strides = [1, 1]} : vector<8x128xf32> to vector<1x128xf32>
    %6 = vector.extract_strided_slice %4 {offsets = [1, 0], sizes = [1, 128], strides = [1, 1]} : vector<8x128xf32> to vector<1x128xf32>
    %7 = vector.extract_strided_slice %4 {offsets = [2, 0], sizes = [1, 128], strides = [1, 1]} : vector<8x128xf32> to vector<1x128xf32>
    %cst = arith.constant dense<0.000000e+00> : vector<512x128xf32>
    %8 = tpu.matmul %0, %1, %cst {dimension_numbers = #tpu.dot_dimension_numbers<[1], [0], [0], [1], [0, 0, 1, 1], [], []>} : vector<512x16xbf16>, vector<16x128xbf16>, vector<512x128xf32> -> vector<512x128xf32>
    %9 = vector.broadcast %5 : vector<1x128xf32> to vector<512x128xf32>
    %10 = arith.addf %8, %9 : vector<512x128xf32>
    %cst_7 = arith.constant 0.000000e+00 : f32
    %11 = vector.broadcast %cst_7 : f32 to vector<512x128xf32>
    %12 = arith.maximumf %10, %11 : vector<512x128xf32>
    %13 = arith.truncf %12 : vector<512x128xf32> to vector<512x128xbf16>
    %cst_8 = arith.constant dense<0.000000e+00> : vector<512x128xf32>
    %14 = tpu.matmul %13, %2, %cst_8 {dimension_numbers = #tpu.dot_dimension_numbers<[1], [0], [0], [1], [0, 0, 1, 1], [], []>} : vector<512x128xbf16>, vector<128x128xbf16>, vector<512x128xf32> -> vector<512x128xf32>
    %15 = vector.broadcast %6 : vector<1x128xf32> to vector<512x128xf32>
    %16 = arith.addf %14, %15 : vector<512x128xf32>
    %cst_9 = arith.constant 0.000000e+00 : f32
    %17 = vector.broadcast %cst_9 : f32 to vector<512x128xf32>
    %18 = arith.maximumf %16, %17 : vector<512x128xf32>
    %19 = arith.truncf %18 : vector<512x128xf32> to vector<512x128xbf16>
    %cst_10 = arith.constant dense<0.000000e+00> : vector<512x128xf32>
    %20 = tpu.matmul %19, %3, %cst_10 {dimension_numbers = #tpu.dot_dimension_numbers<[1], [0], [0], [1], [0, 0, 1, 1], [], []>} : vector<512x128xbf16>, vector<128x128xbf16>, vector<512x128xf32> -> vector<512x128xf32>
    %21 = vector.broadcast %7 : vector<1x128xf32> to vector<512x128xf32>
    %22 = arith.addf %20, %21 : vector<512x128xf32>
    %23 = math.tanh %22 : vector<512x128xf32>
    %cst_11 = arith.constant 1.000000e+00 : f32
    %24 = vector.broadcast %cst_11 : f32 to vector<512x128xf32>
    %25 = arith.mulf %24, %23 : vector<512x128xf32>
    %c0_12 = arith.constant 0 : index
    %c0_13 = arith.constant 0 : index
    %26 = vector.load %arg4[%c0_12, %c0_13] : memref<512x128xf32, #tpu.memory_space<vmem>>, vector<512x128xf32>
    tpu.vector_store %arg4[%c0_12, %c0_13], %25 {strides = array<i32>} : memref<512x128xf32, #tpu.memory_space<vmem>>, vector<512x128xf32>,
    return
  }
  func.func @transform_0(%arg0: i32) -> (i32, i32) {
    %c0_i32 = arith.constant 0 : i32
    %c0_i32_0 = arith.constant 0 : i32
    return %arg0, %c0_i32 : i32, i32
  }
  func.func @transform_1(%arg0: i32) -> (i32, i32) {
    %c0_i32 = arith.constant 0 : i32
    %c0_i32_0 = arith.constant 0 : i32
    %c0_i32_1 = arith.constant 0 : i32
    return %c0_i32, %c0_i32_0 : i32, i32
  }
  func.func @transform_2(%arg0: i32) -> (i32, i32) {
    %c0_i32 = arith.constant 0 : i32
    %c0_i32_0 = arith.constant 0 : i32
    %c0_i32_1 = arith.constant 0 : i32
    return %c0_i32, %c0_i32_0 : i32, i32
  }
  func.func @transform_3(%arg0: i32) -> (i32, i32) {
    %c0_i32 = arith.constant 0 : i32
    %c0_i32_0 = arith.constant 0 : i32
    return %arg0, %c0_i32 : i32, i32
  }
}

</mosaic_0001>

<llo_original>
// kernel: tpu_custom_call.1
$region0: #{tpu_custom_call.1}
  #allocation0 [shape = 'u32[]', space=smem, size = 0x4, offset = 0x4, fixed_abs, tag = 'smem constant byte address 0x4 - core index']
  #allocation1 [shape = 'u32[72,128]{1,0:T(1,128)}', space=vmem, size = 0x9000, scoped, tag = 'internal scratch']
  %s0 = inlined_call_operand.vmem [shape: bf16[1024,16], index: 0, kind: input, shape index: {}]
  %s1 = inlined_call_operand.vmem [shape: bf16[272,128], index: 1, kind: input, shape index: {}]
  %s2 = inlined_call_operand.vmem [shape: f32[8,128], index: 2, kind: input, shape index: {}]
  %s3 = inlined_call_operand.hbm [shape: f32[1024,128], index: 3, kind: output, shape index: {}]
  %s4 = sld [smem:[#allocation0]]
  $region45: #{tpu_custom_call.1} parent=0
    _
  %s6 = ssub.s32 1, %s4
  %s7 = scalar_select 0, %s6, %s4
  $region1: #{tpu_custom_call.1} parent=0
    #allocation2 [shape = 'u8[524288]{0}', space=vmem, size = 0x80000, scoped, tag = 'output window, operand 0']
    #allocation3 [shape = 's32[2]{0}', space=sflag, size = 0x8, scoped, tag = 'scoped memory for tpu_custom_call.1']
    %8 = vsyncpa [#allocation3], 0
    %s9 = scalar_lea.sflag [#allocation3], 1
    %10 = vsyncpa %s9, 0
    loop: start=0, step=1, limit=4
    $region2: #{tpu_custom_call.1} parent=1 // loop_pre_header
      _
    $region3: #{tpu_custom_call.1} parent=1 // loop_header
      %s12 = sphi 0, %s16
      %p13 = scmp.ge.s32.totalorder %s12, 4
      %s22 = sphi 0, %s24
      %s25 = sphi 0, %s22
      %s26 = sphi 0, %s25
      %s42 = sphi 0, %s26
      %s46 = sphi 0, %s46
      %s48 = sphi 0, %s46
      %s49 = sphi 0, %s48
      %s63 = sphi 0, %s49
      %s67 = sphi 0, %s67
      %s69 = sphi 0, %s67
      %s70 = sphi 0, %s69
      %s84 = sphi 0, %s70
      %s90 = sphi 0, %s92
      %s93 = sphi 0, %s90
      %s94 = sphi 0, %s93
      %s110 = sphi 0, %s94
    $region4: #{tpu_custom_call.1} parent=1 // loop_header_branch
      %15 = sbr.rel (%p13) target = $region8
    $region5: #{tpu_custom_call.1} parent=1 // loop_body
      %s17 = ssub.s32 %s12, 1
      %s18 = ssub.s32 %s12, 2
      %s19 = sadd.s32 %s12, 1
      %s20 = ssub.s32 %s12, %s19
      %p21 = scmp.eq.s32.totalorder %s20, 0
      %s23 = sadd.s32 %s22, 1
      %s24 = scalar_select %p21, %s22, %s23
      %p27 = pneg %p21
      %p28 = scmp.eq.s32.totalorder %s12, 1
      %p29 = por %p27, %p28
      %p30 = scmp.ne.s32.totalorder %s22, %s25
      %p31 = scmp.eq.s32.totalorder %s12, 0
      %p32 = por %p30, %p31
      %p33 = scmp.ne.s32.totalorder %s22, %s25
      %p34 = scmp.eq.s32.totalorder %s17, 1
      %p35 = por %p33, %p34
      %p36 = scmp.ne.s32.totalorder %s25, %s26
      %p37 = scmp.eq.s32.totalorder %s17, 0
      %p38 = por %p36, %p37
      %p39 = scmp.ne.s32.totalorder %s25, %s26
      %p40 = scmp.eq.s32.totalorder %s18, 1
      %p41 = por %p39, %p40
      %p43 = scmp.ne.s32.totalorder %s26, %s42
      %p44 = scmp.eq.s32.totalorder %s18, 0
      %p45 = por %p43, %p44
      %s47 = sadd.s32 %s46, 1
      %p50 = scmp.eq.s32.totalorder %s12, 1
      %p51 = scmp.ne.s32.totalorder %s46, %s48
      %p52 = scmp.eq.s32.totalorder %s12, 0
      %p53 = por %p51, %p52
      %p54 = scmp.ne.s32.totalorder %s46, %s48
      %p55 = scmp.eq.s32.totalorder %s17, 1
      %p56 = por %p54, %p55
      %p57 = scmp.ne.s32.totalorder %s48, %s49
      %p58 = scmp.eq.s32.totalorder %s17, 0
      %p59 = por %p57, %p58
      %p60 = scmp.ne.s32.totalorder %s48, %s49
      %p61 = scmp.eq.s32.totalorder %s18, 1
      %p62 = por %p60, %p61
      %p64 = scmp.ne.s32.totalorder %s49, %s63
      %p65 = scmp.eq.s32.totalorder %s18, 0
      %p66 = por %p64, %p65
      %s68 = sadd.s32 %s67, 1
      %p71 = scmp.eq.s32.totalorder %s12, 1
      %p72 = scmp.ne.s32.totalorder %s67, %s69
      %p73 = scmp.eq.s32.totalorder %s12, 0
      %p74 = por %p72, %p73
      %p75 = scmp.ne.s32.totalorder %s67, %s69
      %p76 = scmp.eq.s32.totalorder %s17, 1
      %p77 = por %p75, %p76
      %p78 = scmp.ne.s32.totalorder %s69, %s70
      %p79 = scmp.eq.s32.totalorder %s17, 0
      %p80 = por %p78, %p79
      %p81 = scmp.ne.s32.totalorder %s69, %s70
      %p82 = scmp.eq.s32.totalorder %s18, 1
      %p83 = por %p81, %p82
      %p85 = scmp.ne.s32.totalorder %s70, %s84
      %p86 = scmp.eq.s32.totalorder %s18, 0
      %p87 = por %p85, %p86
      %s88 = ssub.s32 %s12, %s19
      %p89 = scmp.eq.s32.totalorder %s88, 0
      %s91 = sadd.s32 %s90, 1
      %s92 = scalar_select %p89, %s90, %s91
      %p95 = pneg %p89
      %p96 = scmp.eq.s32.totalorder %s12, 1
      %p97 = por %p95, %p96
      %p98 = scmp.ne.s32.totalorder %s90, %s93
      %p99 = scmp.eq.s32.totalorder %s12, 0
      %p100 = por %p98, %p99
      %p101 = scmp.ne.s32.totalorder %s90, %s93
      %p102 = scmp.eq.s32.totalorder %s17, 1
      %p103 = por %p101, %p102
      %p104 = scmp.ne.s32.totalorder %s93, %s94
      %p105 = scmp.eq.s32.totalorder %s17, 0
      %p106 = por %p104, %p105
      %p107 = scmp.ne.s32.totalorder %s93, %s94
      %p108 = scmp.eq.s32.totalorder %s18, 1
      %p109 = por %p107, %p108
      %p111 = scmp.ne.s32.totalorder %s94, %s110
      %p112 = scmp.eq.s32.totalorder %s18, 0
      %p113 = por %p111, %p112
      %p114 = scmp.le.s32.totalorder 1, %s12
      %p115 = scmp.lt.s32.totalorder %s12, 3
      %p116 = pnand %p114, %p115
      %p117 = pneg %p116
      // Predicated region
      $region9: #{tpu_custom_call.1} parent=5 // pred_check
        _
      $region10: #{tpu_custom_call.1} parent=5 // pred_check_branch
        %119 = sbr.rel (%p116) target = $region12
      $region11: #{tpu_custom_call.1} parent=5 // pred_region
        %s120 = ssub.s32 %s12, 1
        // Predicated region
        $region13: #{tpu_custom_call.1} parent=11 // pred_check
          %p121 = pneg %p59
        $region14: #{tpu_custom_call.1} parent=11 // pred_check_branch
          %123 = sbr.rel (%p121) target = $region16
        $region15: #{tpu_custom_call.1} parent=11 // pred_region
          _
        $region16: #{tpu_custom_call.1} parent=11 // pred_fallthru
          _
        // Predicated region
        $region17: #{tpu_custom_call.1} parent=11 // pred_check
          %p124 = pneg %p80
        $region18: #{tpu_custom_call.1} parent=11 // pred_check_branch
          %126 = sbr.rel (%p124) target = $region20
        $region19: #{tpu_custom_call.1} parent=11 // pred_region
          _
        $region20: #{tpu_custom_call.1} parent=11 // pred_fallthru
          _
      $region12: #{tpu_custom_call.1} parent=5 // pred_fallthru
        _
      %p127 = scmp.lt.s32.totalorder %s12, 2
      // Predicated region
      $region21: #{tpu_custom_call.1} parent=5 // pred_check
        %p128 = pneg %p127
      $region22: #{tpu_custom_call.1} parent=5 // pred_check_branch
        %130 = sbr.rel (%p128) target = $region24
      $region23: #{tpu_custom_call.1} parent=5 // pred_region
        // Predicated region
        $region25: #{tpu_custom_call.1} parent=23 // pred_check
          %p131 = pneg %p32
        $region26: #{tpu_custom_call.1} parent=23 // pred_check_branch
          %133 = sbr.rel (%p131) target = $region28
        $region27: #{tpu_custom_call.1} parent=23 // pred_region
          %s134 = smul.u32 64, %s12
          %p135 = scmp.lt.s32.totalorder %s134, 127
          %s136 = scalar_select %p135, %s134, 127
          %s137 = smul.addr %s136, 4
          %s138 = scalar_lea.vmem %s0, %s137
          %s139 = smul.u32 64, %s12
        $region28: #{tpu_custom_call.1} parent=23 // pred_fallthru
          _
      $region24: #{tpu_custom_call.1} parent=5 // pred_fallthru
        _
      %p140 = scmp.le.s32.totalorder 1, %s12
      %p141 = scmp.lt.s32.totalorder %s12, 3
      %p142 = pnand %p140, %p141
      %p143 = pneg %p142
      // Predicated region
      $region29: #{tpu_custom_call.1} parent=5 // pred_check
        _
      $region30: #{tpu_custom_call.1} parent=5 // pred_check_branch
        %145 = sbr.rel (%p142) target = $region32
      $region31: #{tpu_custom_call.1} parent=5 // pred_region
        %s146 = ssub.s32 %s12, 1
        %s147 = smul.u32 64, %s17
        %p148 = scmp.lt.s32.totalorder %s147, 127
        %s149 = scalar_select %p148, %s147, 127
        %s150 = smul.addr %s149, 4
        %s151 = scalar_lea.vmem %s0, %s150
        %p152 = pneg %p38
        %p153 = pneg %p35
        %p154 = pneg %p59
        %p155 = pneg %p56
        %p156 = pneg %p80
        %p157 = pneg %p77
        %p158 = pneg %p106
        %p159 = pneg %p103
        %s160 = sand.u32 %s93, 1
        %s161 = scalar_lea.sflag [#allocation3], %s160
        %s162 = sand.u32 %s93, 1
        %s163 = smul.addr %s162, 512
        %s164 = scalar_lea.vmem [#allocation2], %s163
        %s165 = smul.u32 64, %s17
        %p166 = scmp.lt.s32.totalorder %s165, 127
        %s167 = scalar_select %p166, %s165, 127
        %s168 = smul.addr %s167, 4
        %s169 = scalar_lea.vmem %s0, %s168
        %s170 = smul.u32 64, %s17
        %s171 = smul.u32 64, %s17
        %v173 = vld [vmem:[%s169] sm:$0xf]
        %v174 = vld [vmem:[%s169 + $0x4] sm:$0xf]
        %v175 = vld [vmem:[%s169 + $0x8] sm:$0xf]
        %v176 = vld [vmem:[%s169 + $0xc] sm:$0xf]
        %v177 = vld [vmem:[%s169 + $0x10] sm:$0xf]
        %v178 = vld [vmem:[%s169 + $0x14] sm:$0xf]
        %v179 = vld [vmem:[%s169 + $0x18] sm:$0xf]
        %v180 = vld [vmem:[%s169 + $0x1c] sm:$0xf]
        %v181 = vld [vmem:[%s169 + $0x20] sm:$0xf]
        %v182 = vld [vmem:[%s169 + $0x24] sm:$0xf]
        %v183 = vld [vmem:[%s169 + $0x28] sm:$0xf]
        %v184 = vld [vmem:[%s169 + $0x2c] sm:$0xf]
        %v185 = vld [vmem:[%s169 + $0x30] sm:$0xf]
        %v186 = vld [vmem:[%s169 + $0x34] sm:$0xf]
        %v187 = vld [vmem:[%s169 + $0x38] sm:$0xf]
        %v188 = vld [vmem:[%s169 + $0x3c] sm:$0xf]
        %v189 = vld [vmem:[%s169 + $0x40] sm:$0xf]
        %v190 = vld [vmem:[%s169 + $0x44] sm:$0xf]
        %v191 = vld [vmem:[%s169 + $0x48] sm:$0xf]
        %v192 = vld [vmem:[%s169 + $0x4c] sm:$0xf]
        %v193 = vld [vmem:[%s169 + $0x50] sm:$0xf]
        %v194 = vld [vmem:[%s169 + $0x54] sm:$0xf]
        %v195 = vld [vmem:[%s169 + $0x58] sm:$0xf]
        %v196 = vld [vmem:[%s169 + $0x5c] sm:$0xf]
        %v197 = vld [vmem:[%s169 + $0x60] sm:$0xf]
        %v198 = vld [vmem:[%s169 + $0x64] sm:$0xf]
        %v199 = vld [vmem:[%s169 + $0x68] sm:$0xf]
        %v200 = vld [vmem:[%s169 + $0x6c] sm:$0xf]
        %v201 = vld [vmem:[%s169 + $0x70] sm:$0xf]
        %v202 = vld [vmem:[%s169 + $0x74] sm:$0xf]
        %v203 = vld [vmem:[%s169 + $0x78] sm:$0xf]
        %v204 = vld [vmem:[%s169 + $0x7c] sm:$0xf]
        %v205 = vld [vmem:[%s169 + $0x80] sm:$0xf]
        %v206 = vld [vmem:[%s169 + $0x84] sm:$0xf]
        %v207 = vld [vmem:[%s169 + $0x88] sm:$0xf]
        %v208 = vld [vmem:[%s169 + $0x8c] sm:$0xf]
        %v209 = vld [vmem:[%s169 + $0x90] sm:$0xf]
        %v210 = vld [vmem:[%s169 + $0x94] sm:$0xf]
        %v211 = vld [vmem:[%s169 + $0x98] sm:$0xf]
        %v212 = vld [vmem:[%s169 + $0x9c] sm:$0xf]
        %v213 = vld [vmem:[%s169 + $0xa0] sm:$0xf]
        %v214 = vld [vmem:[%s169 + $0xa4] sm:$0xf]
        %v215 = vld [vmem:[%s169 + $0xa8] sm:$0xf]
        %v216 = vld [vmem:[%s169 + $0xac] sm:$0xf]
        %v217 = vld [vmem:[%s169 + $0xb0] sm:$0xf]
        %v218 = vld [vmem:[%s169 + $0xb4] sm:$0xf]
        %v219 = vld [vmem:[%s169 + $0xb8] sm:$0xf]
        %v220 = vld [vmem:[%s169 + $0xbc] sm:$0xf]
        %v221 = vld [vmem:[%s169 + $0xc0] sm:$0xf]
        %v222 = vld [vmem:[%s169 + $0xc4] sm:$0xf]
        %v223 = vld [vmem:[%s169 + $0xc8] sm:$0xf]
        %v224 = vld [vmem:[%s169 + $0xcc] sm:$0xf]
        %v225 = vld [vmem:[%s169 + $0xd0] sm:$0xf]
        %v226 = vld [vmem:[%s169 + $0xd4] sm:$0xf]
        %v227 = vld [vmem:[%s169 + $0xd8] sm:$0xf]
        %v228 = vld [vmem:[%s169 + $0xdc] sm:$0xf]
        %v229 = vld [vmem:[%s169 + $0xe0] sm:$0xf]
        %v230 = vld [vmem:[%s169 + $0xe4] sm:$0xf]
        %v231 = vld [vmem:[%s169 + $0xe8] sm:$0xf]
        %v232 = vld [vmem:[%s169 + $0xec] sm:$0xf]
        %v233 = vld [vmem:[%s169 + $0xf0] sm:$0xf]
        %v234 = vld [vmem:[%s169 + $0xf4] sm:$0xf]
        %v235 = vld [vmem:[%s169 + $0xf8] sm:$0xf]
        %v236 = vld [vmem:[%s169 + $0xfc] sm:$0xf]
        %v237 = vld [vmem:[%s1] sm:$0xf]
        %v238 = vld [vmem:[%s1 + $0x4] sm:$0xf]
        %v239 = vld [vmem:[%s1 + $0x8] sm:$0xf]
        %v240 = vld [vmem:[%s1 + $0xc] sm:$0xf]
        %v241 = vld [vmem:[%s1 + $0x10] sm:$0xf]
        %v242 = vld [vmem:[%s1 + $0x14] sm:$0xf]
        %v243 = vld [vmem:[%s1 + $0x18] sm:$0xf]
        %v244 = vld [vmem:[%s1 + $0x1c] sm:$0xf]
        %v245 = vld [vmem:[%s1 + $0x20] sm:$0xf]
        %v246 = vld [vmem:[%s1 + $0x24] sm:$0xf]
        %v247 = vld [vmem:[%s1 + $0x28] sm:$0xf]
        %v248 = vld [vmem:[%s1 + $0x2c] sm:$0xf]
        %v249 = vld [vmem:[%s1 + $0x30] sm:$0xf]
        %v250 = vld [vmem:[%s1 + $0x34] sm:$0xf]
        %v251 = vld [vmem:[%s1 + $0x38] sm:$0xf]
        %v252 = vld [vmem:[%s1 + $0x3c] sm:$0xf]
        %v253 = vld [vmem:[%s1 + $0x40] sm:$0xf]
        %v254 = vld [vmem:[%s1 + $0x44] sm:$0xf]
        %v255 = vld [vmem:[%s1 + $0x48] sm:$0xf]
        %v256 = vld [vmem:[%s1 + $0x4c] sm:$0xf]
        %v257 = vld [vmem:[%s1 + $0x50] sm:$0xf]
        %v258 = vld [vmem:[%s1 + $0x54] sm:$0xf]
        %v259 = vld [vmem:[%s1 + $0x58] sm:$0xf]
        %v260 = vld [vmem:[%s1 + $0x5c] sm:$0xf]
        %v261 = vld [vmem:[%s1 + $0x60] sm:$0xf]
        %v262 = vld [vmem:[%s1 + $0x64] sm:$0xf]
        %v263 = vld [vmem:[%s1 + $0x68] sm:$0xf]
        %v264 = vld [vmem:[%s1 + $0x6c] sm:$0xf]
        %v265 = vld [vmem:[%s1 + $0x70] sm:$0xf]
        %v266 = vld [vmem:[%s1 + $0x74] sm:$0xf]
        %v267 = vld [vmem:[%s1 + $0x78] sm:$0xf]
        %v268 = vld [vmem:[%s1 + $0x7c] sm:$0xf]
        %v269 = vld [vmem:[%s1 + $0x80] sm:$0xf]
        %v270 = vld [vmem:[%s1 + $0x84] sm:$0xf]
        %v271 = vld [vmem:[%s2] sm:$0xff]
        %v272 = vperm.slane %v271, 0
        %v337 = vunpack.c.l.b16 %v173
        %v338 = vunpack.c.l.b16 %v174
        %v339 = vunpack.c.l.b16 %v175
        %v340 = vunpack.c.l.b16 %v176
        %v341 = vunpack.c.l.b16 %v177
        %v342 = vunpack.c.l.b16 %v178
        %v343 = vunpack.c.l.b16 %v179
        %v344 = vunpack.c.l.b16 %v180
        %v345 = vunpack.c.l.b16 %v181
        %v346 = vunpack.c.l.b16 %v182
        %v347 = vunpack.c.l.b16 %v183
        %v348 = vunpack.c.l.b16 %v184
        %v349 = vunpack.c.l.b16 %v185
        %v350 = vunpack.c.l.b16 %v186
        %v351 = vunpack.c.l.b16 %v187
        %v352 = vunpack.c.l.b16 %v188
        %v353 = vunpack.c.l.b16 %v189
        %v354 = vunpack.c.l.b16 %v190
        %v355 = vunpack.c.l.b16 %v191
        %v356 = vunpack.c.l.b16 %v192
        %v357 = vunpack.c.l.b16 %v193
        %v358 = vunpack.c.l.b16 %v194
        %v359 = vunpack.c.l.b16 %v195
        %v360 = vunpack.c.l.b16 %v196
        %v361 = vunpack.c.l.b16 %v197
        %v362 = vunpack.c.l.b16 %v198
        %v363 = vunpack.c.l.b16 %v199
        %v364 = vunpack.c.l.b16 %v200
        %v365 = vunpack.c.l.b16 %v201
        %v366 = vunpack.c.l.b16 %v202
        %v367 = vunpack.c.l.b16 %v203
        %v368 = vunpack.c.l.b16 %v204
        %v369 = vunpack.c.l.b16 %v205
        %v370 = vunpack.c.l.b16 %v206
        %v371 = vunpack.c.l.b16 %v207
        %v372 = vunpack.c.l.b16 %v208
        %v373 = vunpack.c.l.b16 %v209
        %v374 = vunpack.c.l.b16 %v210
        %v375 = vunpack.c.l.b16 %v211
        %v376 = vunpack.c.l.b16 %v212
        %v377 = vunpack.c.l.b16 %v213
        %v378 = vunpack.c.l.b16 %v214
        %v379 = vunpack.c.l.b16 %v215
        %v380 = vunpack.c.l.b16 %v216
        %v381 = vunpack.c.l.b16 %v217
        %v382 = vunpack.c.l.b16 %v218
        %v383 = vunpack.c.l.b16 %v219
        %v384 = vunpack.c.l.b16 %v220
        %v385 = vunpack.c.l.b16 %v221
        %v386 = vunpack.c.l.b16 %v222
        %v387 = vunpack.c.l.b16 %v223
        %v388 = vunpack.c.l.b16 %v224
        %v389 = vunpack.c.l.b16 %v225
        %v390 = vunpack.c.l.b16 %v226
        %v391 = vunpack.c.l.b16 %v227
        %v392 = vunpack.c.l.b16 %v228
        %v393 = vunpack.c.l.b16 %v229
        %v394 = vunpack.c.l.b16 %v230
        %v395 = vunpack.c.l.b16 %v231
        %v396 = vunpack.c.l.b16 %v232
        %v397 = vunpack.c.l.b16 %v233
        %v398 = vunpack.c.l.b16 %v234
        %v399 = vunpack.c.l.b16 %v235
        %v400 = vunpack.c.l.b16 %v236
        %v401 = vpack.c.b16 %v338, %v337
        %v402 = vpack.c.b16 %v340, %v339
        %v403 = vpack.c.b16 %v342, %v341
        %v404 = vpack.c.b16 %v344, %v343
        %v405 = vpack.c.b16 %v346, %v345
        %v406 = vpack.c.b16 %v348, %v347
        %v407 = vpack.c.b16 %v350, %v349
        %v408 = vpack.c.b16 %v352, %v351
        %v409 = vpack.c.b16 %v354, %v353
        %v410 = vpack.c.b16 %v356, %v355
        %v411 = vpack.c.b16 %v358, %v357
        %v412 = vpack.c.b16 %v360, %v359
        %v413 = vpack.c.b16 %v362, %v361
        %v414 = vpack.c.b16 %v364, %v363
        %v415 = vpack.c.b16 %v366, %v365
        %v416 = vpack.c.b16 %v368, %v367
        %v417 = vpack.c.b16 %v370, %v369
        %v418 = vpack.c.b16 %v372, %v371
        %v419 = vpack.c.b16 %v374, %v373
        %v420 = vpack.c.b16 %v376, %v375
        %v421 = vpack.c.b16 %v378, %v377
        %v422 = vpack.c.b16 %v380, %v379
        %v423 = vpack.c.b16 %v382, %v381
        %v424 = vpack.c.b16 %v384, %v383
        %v425 = vpack.c.b16 %v386, %v385
        %v426 = vpack.c.b16 %v388, %v387
        %v427 = vpack.c.b16 %v390, %v389
        %v428 = vpack.c.b16 %v392, %v391
        %v429 = vpack.c.b16 %v394, %v393
        %v430 = vpack.c.b16 %v396, %v395
        %v431 = vpack.c.b16 %v398, %v397
        %v432 = vpack.c.b16 %v400, %v399
        %v435 = vunpack.c.l.b16 %v237
        %v436 = vunpack.c.l.b16 %v238
        %v437 = vpack.c.b16 %v436, %v435
        %vm439 = vcmask 130048
        %v441 = vsel %vm439, %v401, 0
        %v444 = vsel %vm439, %v402, 0
        %v447 = vsel %vm439, %v403, 0
        %v450 = vsel %vm439, %v404, 0
        %v453 = vsel %vm439, %v405, 0
        %v456 = vsel %vm439, %v406, 0
        %v459 = vsel %vm439, %v407, 0
        %v462 = vsel %vm439, %v408, 0
        %v465 = vsel %vm439, %v409, 0
        %v468 = vsel %vm439, %v410, 0
        %v471 = vsel %vm439, %v411, 0
        %v474 = vsel %vm439, %v412, 0
        %v477 = vsel %vm439, %v413, 0
        %v480 = vsel %vm439, %v414, 0
        %v483 = vsel %vm439, %v415, 0
        %v486 = vsel %vm439, %v416, 0
        %v489 = vsel %vm439, %v417, 0
        %v492 = vsel %vm439, %v418, 0
        %v495 = vsel %vm439, %v419, 0
        %v498 = vsel %vm439, %v420, 0
        %v501 = vsel %vm439, %v421, 0
        %v504 = vsel %vm439, %v422, 0
        %v507 = vsel %vm439, %v423, 0
        %v510 = vsel %vm439, %v424, 0
        %v513 = vsel %vm439, %v425, 0
        %v516 = vsel %vm439, %v426, 0
        %v519 = vsel %vm439, %v427, 0
        %v522 = vsel %vm439, %v428, 0
        %v525 = vsel %vm439, %v429, 0
        %v528 = vsel %vm439, %v430, 0
        %v531 = vsel %vm439, %v431, 0
        %v534 = vsel %vm439, %v432, 0
        %536 = vmatpush.bf16.msra.mxu0 0
        %537 = vmatpush.bf16.msra.mxu0 0
        %538 = vmatpush.bf16.msra.mxu0 0
        %539 = vmatpush.bf16.msra.mxu0 0
        %540 = vmatpush.bf16.msra.mxu0 0
        %541 = vmatpush.bf16.msra.mxu0 0
        %542 = vmatpush.bf16.msra.mxu0 0
        %543 = vmatpush.bf16.msra.mxu0 %v437
        %544 = vmatmul.bf16.gmra.mxu0 %v441
        %v545 = vpop.f32.mrf.mxu0
        %v546 = vadd.f32 %v272, %v545
        %v547 = vpop.f32.mrf.mxu0
        %v548 = vadd.f32 %v272, %v547
        %549 = vmatmul.bf16.gmra.mxu0 %v444
        %v550 = vpop.f32.mrf.mxu0
        %v551 = vadd.f32 %v272, %v550
        %v552 = vpop.f32.mrf.mxu0
        %v553 = vadd.f32 %v272, %v552
        %554 = vmatmul.bf16.gmra.mxu0 %v447
        %v555 = vpop.f32.mrf.mxu0
        %v556 = vadd.f32 %v272, %v555
        %v557 = vpop.f32.mrf.mxu0
        %v558 = vadd.f32 %v272, %v557
        %559 = vmatmul.bf16.gmra.mxu0 %v450
        %v560 = vpop.f32.mrf.mxu0
        %v561 = vadd.f32 %v272, %v560
        %v562 = vpop.f32.mrf.mxu0
        %v563 = vadd.f32 %v272, %v562
        %564 = vmatmul.bf16.gmra.mxu0 %v453
        %v565 = vpop.f32.mrf.mxu0
        %v566 = vadd.f32 %v272, %v565
        %v567 = vpop.f32.mrf.mxu0
        %v568 = vadd.f32 %v272, %v567
        %569 = vmatmul.bf16.gmra.mxu0 %v456
        %v570 = vpop.f32.mrf.mxu0
        %v571 = vadd.f32 %v272, %v570
        %v572 = vpop.f32.mrf.mxu0
        %v573 = vadd.f32 %v272, %v572
        %574 = vmatmul.bf16.gmra.mxu0 %v459
        %v575 = vpop.f32.mrf.mxu0
        %v576 = vadd.f32 %v272, %v575
        %v577 = vpop.f32.mrf.mxu0
        %v578 = vadd.f32 %v272, %v577
        %579 = vmatmul.bf16.gmra.mxu0 %v462
        %v580 = vpop.f32.mrf.mxu0
        %v581 = vadd.f32 %v272, %v580
        %v582 = vpop.f32.mrf.mxu0
        %v583 = vadd.f32 %v272, %v582
        %584 = vmatmul.bf16.gmra.mxu0 %v465
        %v585 = vpop.f32.mrf.mxu0
        %v586 = vadd.f32 %v272, %v585
        %v587 = vpop.f32.mrf.mxu0
        %v588 = vadd.f32 %v272, %v587
        %589 = vmatmul.bf16.gmra.mxu0 %v468
        %v590 = vpop.f32.mrf.mxu0
        %v591 = vadd.f32 %v272, %v590
        %v592 = vpop.f32.mrf.mxu0
        %v593 = vadd.f32 %v272, %v592
        %594 = vmatmul.bf16.gmra.mxu0 %v471
        %v595 = vpop.f32.mrf.mxu0
        %v596 = vadd.f32 %v272, %v595
        %v597 = vpop.f32.mrf.mxu0
        %v598 = vadd.f32 %v272, %v597
        %599 = vmatmul.bf16.gmra.mxu0 %v474
        %v600 = vpop.f32.mrf.mxu0
        %v601 = vadd.f32 %v272, %v600
        %v602 = vpop.f32.mrf.mxu0
        %v603 = vadd.f32 %v272, %v602
        %604 = vmatmul.bf16.gmra.mxu0 %v477
        %v605 = vpop.f32.mrf.mxu0
        %v606 = vadd.f32 %v272, %v605
        %v607 = vpop.f32.mrf.mxu0
        %v608 = vadd.f32 %v272, %v607
        %609 = vmatmul.bf16.gmra.mxu0 %v480
        %v610 = vpop.f32.mrf.mxu0
        %v611 = vadd.f32 %v272, %v610
        %v612 = vpop.f32.mrf.mxu0
        %v613 = vadd.f32 %v272, %v612
        %614 = vmatmul.bf16.gmra.mxu0 %v483
        %v615 = vpop.f32.mrf.mxu0
        %v616 = vadd.f32 %v272, %v615
        %v617 = vpop.f32.mrf.mxu0
        %v618 = vadd.f32 %v272, %v617
        %619 = vmatmul.bf16.gmra.mxu0 %v486
        %v620 = vpop.f32.mrf.mxu0
        %v621 = vadd.f32 %v272, %v620
        %v622 = vpop.f32.mrf.mxu0
        %v623 = vadd.f32 %v272, %v622
        %624 = vmatmul.bf16.gmra.mxu0 %v489
        %v625 = vpop.f32.mrf.mxu0
        %v626 = vadd.f32 %v272, %v625
        %v627 = vpop.f32.mrf.mxu0
        %v628 = vadd.f32 %v272, %v627
        %629 = vmatmul.bf16.gmra.mxu0 %v492
        %v630 = vpop.f32.mrf.mxu0
        %v631 = vadd.f32 %v272, %v630
        %v632 = vpop.f32.mrf.mxu0
        %v633 = vadd.f32 %v272, %v632
        %634 = vmatmul.bf16.gmra.mxu0 %v495
        %v635 = vpop.f32.mrf.mxu0
        %v636 = vadd.f32 %v272, %v635
        %v637 = vpop.f32.mrf.mxu0
        %v638 = vadd.f32 %v272, %v637
        %639 = vmatmul.bf16.gmra.mxu0 %v498
        %v640 = vpop.f32.mrf.mxu0
        %v641 = vadd.f32 %v272, %v640
        %v642 = vpop.f32.mrf.mxu0
        %v643 = vadd.f32 %v272, %v642
        %644 = vmatmul.bf16.gmra.mxu0 %v501
        %v645 = vpop.f32.mrf.mxu0
        %v646 = vadd.f32 %v272, %v645
        %v647 = vpop.f32.mrf.mxu0
        %v648 = vadd.f32 %v272, %v647
        %649 = vmatmul.bf16.gmra.mxu0 %v504
        %v650 = vpop.f32.mrf.mxu0
        %v651 = vadd.f32 %v272, %v650
        %v652 = vpop.f32.mrf.mxu0
        %v653 = vadd.f32 %v272, %v652
        %654 = vmatmul.bf16.gmra.mxu0 %v507
        %v655 = vpop.f32.mrf.mxu0
        %v656 = vadd.f32 %v272, %v655
        %v657 = vpop.f32.mrf.mxu0
        %v658 = vadd.f32 %v272, %v657
        %659 = vmatmul.bf16.gmra.mxu0 %v510
        %v660 = vpop.f32.mrf.mxu0
        %v661 = vadd.f32 %v272, %v660
        %v662 = vpop.f32.mrf.mxu0
        %v663 = vadd.f32 %v272, %v662
        %664 = vmatmul.bf16.gmra.mxu0 %v513
        %v665 = vpop.f32.mrf.mxu0
        %v666 = vadd.f32 %v272, %v665
        %v667 = vpop.f32.mrf.mxu0
        %v668 = vadd.f32 %v272, %v667
        %669 = vmatmul.bf16.gmra.mxu0 %v516
        %v670 = vpop.f32.mrf.mxu0
        %v671 = vadd.f32 %v272, %v670
        %v672 = vpop.f32.mrf.mxu0
        %v673 = vadd.f32 %v272, %v672
        %674 = vmatmul.bf16.gmra.mxu0 %v519
        %v675 = vpop.f32.mrf.mxu0
        %v676 = vadd.f32 %v272, %v675
        %v677 = vpop.f32.mrf.mxu0
        %v678 = vadd.f32 %v272, %v677
        %679 = vmatmul.bf16.gmra.mxu0 %v522
        %v680 = vpop.f32.mrf.mxu0
        %v681 = vadd.f32 %v272, %v680
        %v682 = vpop.f32.mrf.mxu0
        %v683 = vadd.f32 %v272, %v682
        %684 = vmatmul.bf16.gmra.mxu0 %v525
        %v685 = vpop.f32.mrf.mxu0
        %v686 = vadd.f32 %v272, %v685
        %v687 = vpop.f32.mrf.mxu0
        %v688 = vadd.f32 %v272, %v687
        %689 = vmatmul.bf16.gmra.mxu0 %v528
        %v690 = vpop.f32.mrf.mxu0
        %v691 = vadd.f32 %v272, %v690
        %v692 = vpop.f32.mrf.mxu0
        %v693 = vadd.f32 %v272, %v692
        %694 = vmatmul.bf16.gmra.mxu0 %v531
        %v695 = vpop.f32.mrf.mxu0
        %v696 = vadd.f32 %v272, %v695
        %v697 = vpop.f32.mrf.mxu0
        %v698 = vadd.f32 %v272, %v697
        %699 = vmatmul.bf16.gmra.mxu0 %v534
        %v700 = vpop.f32.mrf.mxu0
        %v701 = vadd.f32 %v272, %v700
        %v702 = vpop.f32.mrf.mxu0
        %v703 = vadd.f32 %v272, %v702
        %704 = vdwg.mxu0
        %v705 = vmax.f32 %v546, 0.0
        %v706 = vmax.f32 %v548, 0.0
        %v707 = vmax.f32 %v551, 0.0
        %v708 = vmax.f32 %v553, 0.0
        %v709 = vmax.f32 %v556, 0.0
        %v710 = vmax.f32 %v558, 0.0
        %v711 = vmax.f32 %v561, 0.0
        %v712 = vmax.f32 %v563, 0.0
        %v713 = vmax.f32 %v566, 0.0
        %v714 = vmax.f32 %v568, 0.0
        %v715 = vmax.f32 %v571, 0.0
        %v716 = vmax.f32 %v573, 0.0
        %v717 = vmax.f32 %v576, 0.0
        %v718 = vmax.f32 %v578, 0.0
        %v719 = vmax.f32 %v581, 0.0
        %v720 = vmax.f32 %v583, 0.0
        %v721 = vmax.f32 %v586, 0.0
        %v722 = vmax.f32 %v588, 0.0
        %v723 = vmax.f32 %v591, 0.0
        %v724 = vmax.f32 %v593, 0.0
        %v725 = vmax.f32 %v596, 0.0
        %v726 = vmax.f32 %v598, 0.0
        %v727 = vmax.f32 %v601, 0.0
        %v728 = vmax.f32 %v603, 0.0
        %v729 = vmax.f32 %v606, 0.0
        %v730 = vmax.f32 %v608, 0.0
        %v731 = vmax.f32 %v611, 0.0
        %v732 = vmax.f32 %v613, 0.0
        %v733 = vmax.f32 %v616, 0.0
        %v734 = vmax.f32 %v618, 0.0
        %v735 = vmax.f32 %v621, 0.0
        %v736 = vmax.f32 %v623, 0.0
        %v737 = vmax.f32 %v626, 0.0
        %v738 = vmax.f32 %v628, 0.0
        %v739 = vmax.f32 %v631, 0.0
        %v740 = vmax.f32 %v633, 0.0
        %v741 = vmax.f32 %v636, 0.0
        %v742 = vmax.f32 %v638, 0.0
        %v743 = vmax.f32 %v641, 0.0
        %v744 = vmax.f32 %v643, 0.0
        %v745 = vmax.f32 %v646, 0.0
        %v746 = vmax.f32 %v648, 0.0
        %v747 = vmax.f32 %v651, 0.0
        %v748 = vmax.f32 %v653, 0.0
        %v749 = vmax.f32 %v656, 0.0
        %v750 = vmax.f32 %v658, 0.0
        %v751 = vmax.f32 %v661, 0.0
        %v752 = vmax.f32 %v663, 0.0
        %v753 = vmax.f32 %v666, 0.0
        %v754 = vmax.f32 %v668, 0.0
        %v755 = vmax.f32 %v671, 0.0
        %v756 = vmax.f32 %v673, 0.0
        %v757 = vmax.f32 %v676, 0.0
        %v758 = vmax.f32 %v678, 0.0
        %v759 = vmax.f32 %v681, 0.0
        %v760 = vmax.f32 %v683, 0.0
        %v761 = vmax.f32 %v686, 0.0
        %v762 = vmax.f32 %v688, 0.0
        %v763 = vmax.f32 %v691, 0.0
        %v764 = vmax.f32 %v693, 0.0
        %v765 = vmax.f32 %v696, 0.0
        %v766 = vmax.f32 %v698, 0.0
        %v767 = vmax.f32 %v701, 0.0
        %v768 = vmax.f32 %v703, 0.0
        %v769 = vpack.c.bf16 %v706, %v705
        %v770 = vpack.c.bf16 %v708, %v707
        %v771 = vpack.c.bf16 %v710, %v709
        %v772 = vpack.c.bf16 %v712, %v711
        %v773 = vpack.c.bf16 %v714, %v713
        %v774 = vpack.c.bf16 %v716, %v715
        %v775 = vpack.c.bf16 %v718, %v717
        %v776 = vpack.c.bf16 %v720, %v719
        %v777 = vpack.c.bf16 %v722, %v721
        %v778 = vpack.c.bf16 %v724, %v723
        %v779 = vpack.c.bf16 %v726, %v725
        %v780 = vpack.c.bf16 %v728, %v727
        %v781 = vpack.c.bf16 %v730, %v729
        %v782 = vpack.c.bf16 %v732, %v731
        %v783 = vpack.c.bf16 %v734, %v733
        %v784 = vpack.c.bf16 %v736, %v735
        %v785 = vpack.c.bf16 %v738, %v737
        %v786 = vpack.c.bf16 %v740, %v739
        %v787 = vpack.c.bf16 %v742, %v741
        %v788 = vpack.c.bf16 %v744, %v743
        %v789 = vpack.c.bf16 %v746, %v745
        %v790 = vpack.c.bf16 %v748, %v747
        %v791 = vpack.c.bf16 %v750, %v749
        %v792 = vpack.c.bf16 %v752, %v751
        %v793 = vpack.c.bf16 %v754, %v753
        %v794 = vpack.c.bf16 %v756, %v755
        %v795 = vpack.c.bf16 %v758, %v757
        %v796 = vpack.c.bf16 %v760, %v759
        %v797 = vpack.c.bf16 %v762, %v761
        %v798 = vpack.c.bf16 %v764, %v763
        %v799 = vpack.c.bf16 %v766, %v765
        %v800 = vpack.c.bf16 %v768, %v767
        %v801 = vperm.slane %v271, 1
        %v818 = vunpack.c.l.b16 %v239
        %v819 = vunpack.c.l.b16 %v240
        %v820 = vunpack.c.l.b16 %v241
        %v821 = vunpack.c.l.b16 %v242
        %v822 = vunpack.c.l.b16 %v243
        %v823 = vunpack.c.l.b16 %v244
        %v824 = vunpack.c.l.b16 %v245
        %v825 = vunpack.c.l.b16 %v246
        %v826 = vunpack.c.l.b16 %v247
        %v827 = vunpack.c.l.b16 %v248
        %v828 = vunpack.c.l.b16 %v249
        %v829 = vunpack.c.l.b16 %v250
        %v830 = vunpack.c.l.b16 %v251
        %v831 = vunpack.c.l.b16 %v252
        %v832 = vunpack.c.l.b16 %v253
        %v833 = vunpack.c.l.b16 %v254
        %v834 = vpack.c.b16 %v819, %v818
        %v835 = vpack.c.b16 %v821, %v820
        %v836 = vpack.c.b16 %v823, %v822
        %v837 = vpack.c.b16 %v825, %v824
        %v838 = vpack.c.b16 %v827, %v826
        %v839 = vpack.c.b16 %v829, %v828
        %v840 = vpack.c.b16 %v831, %v830
        %v841 = vpack.c.b16 %v833, %v832
        %850 = vmatpush.bf16.msra.mxu0 %v841
        %851 = vmatpush.bf16.msra.mxu0 %v840
        %852 = vmatpush.bf16.msra.mxu0 %v839
        %853 = vmatpush.bf16.msra.mxu0 %v838
        %854 = vmatpush.bf16.msra.mxu0 %v837
        %855 = vmatpush.bf16.msra.mxu0 %v836
        %856 = vmatpush.bf16.msra.mxu0 %v835
        %857 = vmatpush.bf16.msra.mxu0 %v834
        %858 = vmatmul.bf16.gmra.mxu0 %v769
        %v859 = vpop.f32.mrf.mxu0
        %v860 = vadd.f32 %v801, %v859
        %v861 = vpop.f32.mrf.mxu0
        %v862 = vadd.f32 %v801, %v861
        %863 = vmatmul.bf16.gmra.mxu0 %v770
        %v864 = vpop.f32.mrf.mxu0
        %v865 = vadd.f32 %v801, %v864
        %v866 = vpop.f32.mrf.mxu0
        %v867 = vadd.f32 %v801, %v866
        %868 = vmatmul.bf16.gmra.mxu0 %v771
        %v869 = vpop.f32.mrf.mxu0
        %v870 = vadd.f32 %v801, %v869
        %v871 = vpop.f32.mrf.mxu0
        %v872 = vadd.f32 %v801, %v871
        %873 = vmatmul.bf16.gmra.mxu0 %v772
        %v874 = vpop.f32.mrf.mxu0
        %v875 = vadd.f32 %v801, %v874
        %v876 = vpop.f32.mrf.mxu0
        %v877 = vadd.f32 %v801, %v876
        %878 = vmatmul.bf16.gmra.mxu0 %v773
        %v879 = vpop.f32.mrf.mxu0
        %v880 = vadd.f32 %v801, %v879
        %v881 = vpop.f32.mrf.mxu0
        %v882 = vadd.f32 %v801, %v881
        %883 = vmatmul.bf16.gmra.mxu0 %v774
        %v884 = vpop.f32.mrf.mxu0
        %v885 = vadd.f32 %v801, %v884
        %v886 = vpop.f32.mrf.mxu0
        %v887 = vadd.f32 %v801, %v886
        %888 = vmatmul.bf16.gmra.mxu0 %v775
        %v889 = vpop.f32.mrf.mxu0
        %v890 = vadd.f32 %v801, %v889
        %v891 = vpop.f32.mrf.mxu0
        %v892 = vadd.f32 %v801, %v891
        %893 = vmatmul.bf16.gmra.mxu0 %v776
        %v894 = vpop.f32.mrf.mxu0
        %v895 = vadd.f32 %v801, %v894
        %v896 = vpop.f32.mrf.mxu0
        %v897 = vadd.f32 %v801, %v896
        %898 = vmatmul.bf16.gmra.mxu0 %v777
        %v899 = vpop.f32.mrf.mxu0
        %v900 = vadd.f32 %v801, %v899
        %v901 = vpop.f32.mrf.mxu0
        %v902 = vadd.f32 %v801, %v901
        %903 = vmatmul.bf16.gmra.mxu0 %v778
        %v904 = vpop.f32.mrf.mxu0
        %v905 = vadd.f32 %v801, %v904
        %v906 = vpop.f32.mrf.mxu0
        %v907 = vadd.f32 %v801, %v906
        %908 = vmatmul.bf16.gmra.mxu0 %v779
        %v909 = vpop.f32.mrf.mxu0
        %v910 = vadd.f32 %v801, %v909
        %v911 = vpop.f32.mrf.mxu0
        %v912 = vadd.f32 %v801, %v911
        %913 = vmatmul.bf16.gmra.mxu0 %v780
        %v914 = vpop.f32.mrf.mxu0
        %v915 = vadd.f32 %v801, %v914
        %v916 = vpop.f32.mrf.mxu0
        %v917 = vadd.f32 %v801, %v916
        %918 = vmatmul.bf16.gmra.mxu0 %v781
        %v919 = vpop.f32.mrf.mxu0
        %v920 = vadd.f32 %v801, %v919
        %v921 = vpop.f32.mrf.mxu0
        %v922 = vadd.f32 %v801, %v921
        %923 = vmatmul.bf16.gmra.mxu0 %v782
        %v924 = vpop.f32.mrf.mxu0
        %v925 = vadd.f32 %v801, %v924
        %v926 = vpop.f32.mrf.mxu0
        %v927 = vadd.f32 %v801, %v926
        %928 = vmatmul.bf16.gmra.mxu0 %v783
        %v929 = vpop.f32.mrf.mxu0
        %v930 = vadd.f32 %v801, %v929
        %v931 = vpop.f32.mrf.mxu0
        %v932 = vadd.f32 %v801, %v931
        %933 = vmatmul.bf16.gmra.mxu0 %v784
        %v934 = vpop.f32.mrf.mxu0
        %v935 = vadd.f32 %v801, %v934
        %v936 = vpop.f32.mrf.mxu0
        %v937 = vadd.f32 %v801, %v936
        %938 = vmatmul.bf16.gmra.mxu0 %v785
        %v939 = vpop.f32.mrf.mxu0
        %v940 = vadd.f32 %v801, %v939
        %v941 = vpop.f32.mrf.mxu0
        %v942 = vadd.f32 %v801, %v941
        %943 = vmatmul.bf16.gmra.mxu0 %v786
        %v944 = vpop.f32.mrf.mxu0
        %v945 = vadd.f32 %v801, %v944
        %v946 = vpop.f32.mrf.mxu0
        %v947 = vadd.f32 %v801, %v946
        %948 = vmatmul.bf16.gmra.mxu0 %v787
        %v949 = vpop.f32.mrf.mxu0
        %v950 = vadd.f32 %v801, %v949
        %v951 = vpop.f32.mrf.mxu0
        %v952 = vadd.f32 %v801, %v951
        %953 = vmatmul.bf16.gmra.mxu0 %v788
        %v954 = vpop.f32.mrf.mxu0
        %v955 = vadd.f32 %v801, %v954
        %v956 = vpop.f32.mrf.mxu0
        %v957 = vadd.f32 %v801, %v956
        %958 = vmatmul.bf16.gmra.mxu0 %v789
        %v959 = vpop.f32.mrf.mxu0
        %v960 = vadd.f32 %v801, %v959
        %v961 = vpop.f32.mrf.mxu0
        %v962 = vadd.f32 %v801, %v961
        %963 = vmatmul.bf16.gmra.mxu0 %v790
        %v964 = vpop.f32.mrf.mxu0
        %v965 = vadd.f32 %v801, %v964
        %v966 = vpop.f32.mrf.mxu0
        %v967 = vadd.f32 %v801, %v966
        %968 = vmatmul.bf16.gmra.mxu0 %v791
        %v969 = vpop.f32.mrf.mxu0
        %v970 = vadd.f32 %v801, %v969
        %v971 = vpop.f32.mrf.mxu0
        %v972 = vadd.f32 %v801, %v971
        %973 = vmatmul.bf16.gmra.mxu0 %v792
        %v974 = vpop.f32.mrf.mxu0
        %v975 = vadd.f32 %v801, %v974
        %v976 = vpop.f32.mrf.mxu0
        %v977 = vadd.f32 %v801, %v976
        %978 = vmatmul.bf16.gmra.mxu0 %v793
        %v979 = vpop.f32.mrf.mxu0
        %v980 = vadd.f32 %v801, %v979
        %v981 = vpop.f32.mrf.mxu0
        %v982 = vadd.f32 %v801, %v981
        %983 = vmatmul.bf16.gmra.mxu0 %v794
        %v984 = vpop.f32.mrf.mxu0
        %v985 = vadd.f32 %v801, %v984
        %v986 = vpop.f32.mrf.mxu0
        %v987 = vadd.f32 %v801, %v986
        %988 = vmatmul.bf16.gmra.mxu0 %v795
        %v989 = vpop.f32.mrf.mxu0
        %v990 = vadd.f32 %v801, %v989
        %v991 = vpop.f32.mrf.mxu0
        %v992 = vadd.f32 %v801, %v991
        %993 = vmatmul.bf16.gmra.mxu0 %v796
        %v994 = vpop.f32.mrf.mxu0
        %v995 = vadd.f32 %v801, %v994
        %v996 = vpop.f32.mrf.mxu0
        %v997 = vadd.f32 %v801, %v996
        %998 = vmatmul.bf16.gmra.mxu0 %v797
        %v999 = vpop.f32.mrf.mxu0
        %v1000 = vadd.f32 %v801, %v999
        %v1001 = vpop.f32.mrf.mxu0
        %v1002 = vadd.f32 %v801, %v1001
        %1003 = vmatmul.bf16.gmra.mxu0 %v798
        %v1004 = vpop.f32.mrf.mxu0
        %v1005 = vadd.f32 %v801, %v1004
        %v1006 = vpop.f32.mrf.mxu0
        %v1007 = vadd.f32 %v801, %v1006
        %1008 = vmatmul.bf16.gmra.mxu0 %v799
        %v1009 = vpop.f32.mrf.mxu0
        %v1010 = vadd.f32 %v801, %v1009
        %v1011 = vpop.f32.mrf.mxu0
        %v1012 = vadd.f32 %v801, %v1011
        %1013 = vmatmul.bf16.gmra.mxu0 %v800
        %v1014 = vpop.f32.mrf.mxu0
        %v1015 = vadd.f32 %v801, %v1014
        %v1016 = vpop.f32.mrf.mxu0
        %v1017 = vadd.f32 %v801, %v1016
        %1018 = vdwg.mxu0
        %v1019 = vmax.f32 %v860, 0.0
        %v1020 = vmax.f32 %v862, 0.0
        %v1021 = vmax.f32 %v865, 0.0
        %v1022 = vmax.f32 %v867, 0.0
        %v1023 = vmax.f32 %v870, 0.0
        %v1024 = vmax.f32 %v872, 0.0
        %v1025 = vmax.f32 %v875, 0.0
        %v1026 = vmax.f32 %v877, 0.0
        %v1027 = vmax.f32 %v880, 0.0
        %v1028 = vmax.f32 %v882, 0.0
        %v1029 = vmax.f32 %v885, 0.0
        %v1030 = vmax.f32 %v887, 0.0
        %v1031 = vmax.f32 %v890, 0.0
        %v1032 = vmax.f32 %v892, 0.0
        %v1033 = vmax.f32 %v895, 0.0
        %v1034 = vmax.f32 %v897, 0.0
        %v1035 = vmax.f32 %v900, 0.0
        %v1036 = vmax.f32 %v902, 0.0
        %v1037 = vmax.f32 %v905, 0.0
        %v1038 = vmax.f32 %v907, 0.0
        %v1039 = vmax.f32 %v910, 0.0
        %v1040 = vmax.f32 %v912, 0.0
        %v1041 = vmax.f32 %v915, 0.0
        %v1042 = vmax.f32 %v917, 0.0
        %v1043 = vmax.f32 %v920, 0.0
        %v1044 = vmax.f32 %v922, 0.0
        %v1045 = vmax.f32 %v925, 0.0
        %v1046 = vmax.f32 %v927, 0.0
        %v1047 = vmax.f32 %v930, 0.0
        %v1048 = vmax.f32 %v932, 0.0
        %v1049 = vmax.f32 %v935, 0.0
        %v1050 = vmax.f32 %v937, 0.0
        %v1051 = vmax.f32 %v940, 0.0
        %v1052 = vmax.f32 %v942, 0.0
        %v1053 = vmax.f32 %v945, 0.0
        %v1054 = vmax.f32 %v947, 0.0
        %v1055 = vmax.f32 %v950, 0.0
        %v1056 = vmax.f32 %v952, 0.0
        %v1057 = vmax.f32 %v955, 0.0
        %v1058 = vmax.f32 %v957, 0.0
        %v1059 = vmax.f32 %v960, 0.0
        %v1060 = vmax.f32 %v962, 0.0
        %v1061 = vmax.f32 %v965, 0.0
        %v1062 = vmax.f32 %v967, 0.0
        %v1063 = vmax.f32 %v970, 0.0
        %v1064 = vmax.f32 %v972, 0.0
        %v1065 = vmax.f32 %v975, 0.0
        %v1066 = vmax.f32 %v977, 0.0
        %v1067 = vmax.f32 %v980, 0.0
        %v1068 = vmax.f32 %v982, 0.0
        %v1069 = vmax.f32 %v985, 0.0
        %v1070 = vmax.f32 %v987, 0.0
        %v1071 = vmax.f32 %v990, 0.0
        %v1072 = vmax.f32 %v992, 0.0
        %v1073 = vmax.f32 %v995, 0.0
        %v1074 = vmax.f32 %v997, 0.0
        %v1075 = vmax.f32 %v1000, 0.0
        %v1076 = vmax.f32 %v1002, 0.0
        %v1077 = vmax.f32 %v1005, 0.0
        %v1078 = vmax.f32 %v1007, 0.0
        %v1079 = vmax.f32 %v1010, 0.0
        %v1080 = vmax.f32 %v1012, 0.0
        %v1081 = vmax.f32 %v1015, 0.0
        %v1082 = vmax.f32 %v1017, 0.0
        %v1083 = vpack.c.bf16 %v1020, %v1019
        %v1084 = vpack.c.bf16 %v1022, %v1021
        %v1085 = vpack.c.bf16 %v1024, %v1023
        %v1086 = vpack.c.bf16 %v1026, %v1025
        %v1087 = vpack.c.bf16 %v1028, %v1027
        %v1088 = vpack.c.bf16 %v1030, %v1029
        %v1089 = vpack.c.bf16 %v1032, %v1031
        %v1090 = vpack.c.bf16 %v1034, %v1033
        %v1091 = vpack.c.bf16 %v1036, %v1035
        %v1092 = vpack.c.bf16 %v1038, %v1037
        %v1093 = vpack.c.bf16 %v1040, %v1039
        %v1094 = vpack.c.bf16 %v1042, %v1041
        %v1095 = vpack.c.bf16 %v1044, %v1043
        %v1096 = vpack.c.bf16 %v1046, %v1045
        %v1097 = vpack.c.bf16 %v1048, %v1047
        %v1098 = vpack.c.bf16 %v1050, %v1049
        %v1099 = vpack.c.bf16 %v1052, %v1051
        %v1100 = vpack.c.bf16 %v1054, %v1053
        %v1101 = vpack.c.bf16 %v1056, %v1055
        %v1102 = vpack.c.bf16 %v1058, %v1057
        %v1103 = vpack.c.bf16 %v1060, %v1059
        %v1104 = vpack.c.bf16 %v1062, %v1061
        %v1105 = vpack.c.bf16 %v1064, %v1063
        %v1106 = vpack.c.bf16 %v1066, %v1065
        %v1107 = vpack.c.bf16 %v1068, %v1067
        %v1108 = vpack.c.bf16 %v1070, %v1069
        %v1109 = vpack.c.bf16 %v1072, %v1071
        %v1110 = vpack.c.bf16 %v1074, %v1073
        %v1111 = vpack.c.bf16 %v1076, %v1075
        %v1112 = vpack.c.bf16 %v1078, %v1077
        %v1113 = vpack.c.bf16 %v1080, %v1079
        %v1114 = vpack.c.bf16 %v1082, %v1081
        %v1115 = vperm.slane %v271, 2
        %v1132 = vunpack.c.l.b16 %v255
        %v1133 = vunpack.c.l.b16 %v256
        %v1134 = vunpack.c.l.b16 %v257
        %v1135 = vunpack.c.l.b16 %v258
        %v1136 = vunpack.c.l.b16 %v259
        %v1137 = vunpack.c.l.b16 %v260
        %v1138 = vunpack.c.l.b16 %v261
        %v1139 = vunpack.c.l.b16 %v262
        %v1140 = vunpack.c.l.b16 %v263
        %v1141 = vunpack.c.l.b16 %v264
        %v1142 = vunpack.c.l.b16 %v265
        %v1143 = vunpack.c.l.b16 %v266
        %v1144 = vunpack.c.l.b16 %v267
        %v1145 = vunpack.c.l.b16 %v268
        %v1146 = vunpack.c.l.b16 %v269
        %v1147 = vunpack.c.l.b16 %v270
        %v1148 = vpack.c.b16 %v1133, %v1132
        %v1149 = vpack.c.b16 %v1135, %v1134
        %v1150 = vpack.c.b16 %v1137, %v1136
        %v1151 = vpack.c.b16 %v1139, %v1138
        %v1152 = vpack.c.b16 %v1141, %v1140
        %v1153 = vpack.c.b16 %v1143, %v1142
        %v1154 = vpack.c.b16 %v1145, %v1144
        %v1155 = vpack.c.b16 %v1147, %v1146
        %1164 = vmatpush.bf16.msra.mxu0 %v1155
        %1165 = vmatpush.bf16.msra.mxu0 %v1154
        %1166 = vmatpush.bf16.msra.mxu0 %v1153
        %1167 = vmatpush.bf16.msra.mxu0 %v1152
        %1168 = vmatpush.bf16.msra.mxu0 %v1151
        %1169 = vmatpush.bf16.msra.mxu0 %v1150
        %1170 = vmatpush.bf16.msra.mxu0 %v1149
        %1171 = vmatpush.bf16.msra.mxu0 %v1148
        %1172 = vmatmul.bf16.gmra.mxu0 %v1083
        %v1173 = vpop.f32.mrf.mxu0
        %v1174 = vadd.f32 %v1115, %v1173
        %v1175 = vpop.f32.mrf.mxu0
        %v1176 = vadd.f32 %v1115, %v1175
        %1177 = vmatmul.bf16.gmra.mxu0 %v1084
        %v1178 = vpop.f32.mrf.mxu0
        %v1179 = vadd.f32 %v1115, %v1178
        %v1180 = vpop.f32.mrf.mxu0
        %v1181 = vadd.f32 %v1115, %v1180
        %1182 = vmatmul.bf16.gmra.mxu0 %v1085
        %v1183 = vpop.f32.mrf.mxu0
        %v1184 = vadd.f32 %v1115, %v1183
        %v1185 = vpop.f32.mrf.mxu0
        %v1186 = vadd.f32 %v1115, %v1185
        %1187 = vmatmul.bf16.gmra.mxu0 %v1086
        %v1188 = vpop.f32.mrf.mxu0
        %v1189 = vadd.f32 %v1115, %v1188
        %v1190 = vpop.f32.mrf.mxu0
        %v1191 = vadd.f32 %v1115, %v1190
        %1192 = vmatmul.bf16.gmra.mxu0 %v1087
        %v1193 = vpop.f32.mrf.mxu0
        %v1194 = vadd.f32 %v1115, %v1193
        %v1195 = vpop.f32.mrf.mxu0
        %v1196 = vadd.f32 %v1115, %v1195
        %1197 = vmatmul.bf16.gmra.mxu0 %v1088
        %v1198 = vpop.f32.mrf.mxu0
        %v1199 = vadd.f32 %v1115, %v1198
        %v1200 = vpop.f32.mrf.mxu0
        %v1201 = vadd.f32 %v1115, %v1200
        %1202 = vmatmul.bf16.gmra.mxu0 %v1089
        %v1203 = vpop.f32.mrf.mxu0
        %v1204 = vadd.f32 %v1115, %v1203
        %v1205 = vpop.f32.mrf.mxu0
        %v1206 = vadd.f32 %v1115, %v1205
        %1207 = vmatmul.bf16.gmra.mxu0 %v1090
        %v1208 = vpop.f32.mrf.mxu0
        %v1209 = vadd.f32 %v1115, %v1208
        %v1210 = vpop.f32.mrf.mxu0
        %v1211 = vadd.f32 %v1115, %v1210
        %1212 = vmatmul.bf16.gmra.mxu0 %v1091
        %v1213 = vpop.f32.mrf.mxu0
        %v1214 = vadd.f32 %v1115, %v1213
        %v1215 = vpop.f32.mrf.mxu0
        %v1216 = vadd.f32 %v1115, %v1215
        %1217 = vmatmul.bf16.gmra.mxu0 %v1092
        %v1218 = vpop.f32.mrf.mxu0
        %v1219 = vadd.f32 %v1115, %v1218
        %v1220 = vpop.f32.mrf.mxu0
        %v1221 = vadd.f32 %v1115, %v1220
        %1222 = vmatmul.bf16.gmra.mxu0 %v1093
        %v1223 = vpop.f32.mrf.mxu0
        %v1224 = vadd.f32 %v1115, %v1223
        %v1225 = vpop.f32.mrf.mxu0
        %v1226 = vadd.f32 %v1115, %v1225
        %1227 = vmatmul.bf16.gmra.mxu0 %v1094
        %v1228 = vpop.f32.mrf.mxu0
        %v1229 = vadd.f32 %v1115, %v1228
        %v1230 = vpop.f32.mrf.mxu0
        %v1231 = vadd.f32 %v1115, %v1230
        %1232 = vmatmul.bf16.gmra.mxu0 %v1095
        %v1233 = vpop.f32.mrf.mxu0
        %v1234 = vadd.f32 %v1115, %v1233
        %v1235 = vpop.f32.mrf.mxu0
        %v1236 = vadd.f32 %v1115, %v1235
        %1237 = vmatmul.bf16.gmra.mxu0 %v1096
        %v1238 = vpop.f32.mrf.mxu0
        %v1239 = vadd.f32 %v1115, %v1238
        %v1240 = vpop.f32.mrf.mxu0
        %v1241 = vadd.f32 %v1115, %v1240
        %1242 = vmatmul.bf16.gmra.mxu0 %v1097
        %v1243 = vpop.f32.mrf.mxu0
        %v1244 = vadd.f32 %v1115, %v1243
        %v1245 = vpop.f32.mrf.mxu0
        %v1246 = vadd.f32 %v1115, %v1245
        %1247 = vmatmul.bf16.gmra.mxu0 %v1098
        %v1248 = vpop.f32.mrf.mxu0
        %v1249 = vadd.f32 %v1115, %v1248
        %v1250 = vpop.f32.mrf.mxu0
        %v1251 = vadd.f32 %v1115, %v1250
        %1252 = vmatmul.bf16.gmra.mxu0 %v1099
        %v1253 = vpop.f32.mrf.mxu0
        %v1254 = vadd.f32 %v1115, %v1253
        %v1255 = vpop.f32.mrf.mxu0
        %v1256 = vadd.f32 %v1115, %v1255
        %1257 = vmatmul.bf16.gmra.mxu0 %v1100
        %v1258 = vpop.f32.mrf.mxu0
        %v1259 = vadd.f32 %v1115, %v1258
        %v1260 = vpop.f32.mrf.mxu0
        %v1261 = vadd.f32 %v1115, %v1260
        %1262 = vmatmul.bf16.gmra.mxu0 %v1101
        %v1263 = vpop.f32.mrf.mxu0
        %v1264 = vadd.f32 %v1115, %v1263
        %v1265 = vpop.f32.mrf.mxu0
        %v1266 = vadd.f32 %v1115, %v1265
        %1267 = vmatmul.bf16.gmra.mxu0 %v1102
        %v1268 = vpop.f32.mrf.mxu0
        %v1269 = vadd.f32 %v1115, %v1268
        %v1270 = vpop.f32.mrf.mxu0
        %v1271 = vadd.f32 %v1115, %v1270
        %1272 = vmatmul.bf16.gmra.mxu0 %v1103
        %v1273 = vpop.f32.mrf.mxu0
        %v1274 = vadd.f32 %v1115, %v1273
        %v1275 = vpop.f32.mrf.mxu0
        %v1276 = vadd.f32 %v1115, %v1275
        %1277 = vmatmul.bf16.gmra.mxu0 %v1104
        %v1278 = vpop.f32.mrf.mxu0
        %v1279 = vadd.f32 %v1115, %v1278
        %v1280 = vpop.f32.mrf.mxu0
        %v1281 = vadd.f32 %v1115, %v1280
        %1282 = vmatmul.bf16.gmra.mxu0 %v1105
        %v1283 = vpop.f32.mrf.mxu0
        %v1284 = vadd.f32 %v1115, %v1283
        %v1285 = vpop.f32.mrf.mxu0
        %v1286 = vadd.f32 %v1115, %v1285
        %1287 = vmatmul.bf16.gmra.mxu0 %v1106
        %v1288 = vpop.f32.mrf.mxu0
        %v1289 = vadd.f32 %v1115, %v1288
        %v1290 = vpop.f32.mrf.mxu0
        %v1291 = vadd.f32 %v1115, %v1290
        %1292 = vmatmul.bf16.gmra.mxu0 %v1107
        %v1293 = vpop.f32.mrf.mxu0
        %v1294 = vadd.f32 %v1115, %v1293
        %v1295 = vpop.f32.mrf.mxu0
        %v1296 = vadd.f32 %v1115, %v1295
        %1297 = vmatmul.bf16.gmra.mxu0 %v1108
        %v1298 = vpop.f32.mrf.mxu0
        %v1299 = vadd.f32 %v1115, %v1298
        %v1300 = vpop.f32.mrf.mxu0
        %v1301 = vadd.f32 %v1115, %v1300
        %1302 = vmatmul.bf16.gmra.mxu0 %v1109
        %v1303 = vpop.f32.mrf.mxu0
        %v1304 = vadd.f32 %v1115, %v1303
        %v1305 = vpop.f32.mrf.mxu0
        %v1306 = vadd.f32 %v1115, %v1305
        %1307 = vmatmul.bf16.gmra.mxu0 %v1110
        %v1308 = vpop.f32.mrf.mxu0
        %v1309 = vadd.f32 %v1115, %v1308
        %v1310 = vpop.f32.mrf.mxu0
        %v1311 = vadd.f32 %v1115, %v1310
        %1312 = vmatmul.bf16.gmra.mxu0 %v1111
        %v1313 = vpop.f32.mrf.mxu0
        %v1314 = vadd.f32 %v1115, %v1313
        %v1315 = vpop.f32.mrf.mxu0
        %v1316 = vadd.f32 %v1115, %v1315
        %1317 = vmatmul.bf16.gmra.mxu0 %v1112
        %v1318 = vpop.f32.mrf.mxu0
        %v1319 = vadd.f32 %v1115, %v1318
        %v1320 = vpop.f32.mrf.mxu0
        %v1321 = vadd.f32 %v1115, %v1320
        %1322 = vmatmul.bf16.gmra.mxu0 %v1113
        %v1323 = vpop.f32.mrf.mxu0
        %v1324 = vadd.f32 %v1115, %v1323
        %v1325 = vpop.f32.mrf.mxu0
        %v1326 = vadd.f32 %v1115, %v1325
        %1327 = vmatmul.bf16.gmra.mxu0 %v1114
        %v1328 = vpop.f32.mrf.mxu0
        %v1329 = vadd.f32 %v1115, %v1328
        %v1330 = vpop.f32.mrf.mxu0
        %v1331 = vadd.f32 %v1115, %v1330
        %1332 = vdwg.mxu0
        %v1333 = vtanh.pop %v1174
        %v1334 = vtanh.pop %v1176
        %v1335 = vtanh.pop %v1179
        %v1336 = vtanh.pop %v1181
        %v1337 = vtanh.pop %v1184
        %v1338 = vtanh.pop %v1186
        %v1339 = vtanh.pop %v1189
        %v1340 = vtanh.pop %v1191
        %v1341 = vtanh.pop %v1194
        %v1342 = vtanh.pop %v1196
        %v1343 = vtanh.pop %v1199
        %v1344 = vtanh.pop %v1201
        %v1345 = vtanh.pop %v1204
        %v1346 = vtanh.pop %v1206
        %v1347 = vtanh.pop %v1209
        %v1348 = vtanh.pop %v1211
        %v1349 = vtanh.pop %v1214
        %v1350 = vtanh.pop %v1216
        %v1351 = vtanh.pop %v1219
        %v1352 = vtanh.pop %v1221
        %v1353 = vtanh.pop %v1224
        %v1354 = vtanh.pop %v1226
        %v1355 = vtanh.pop %v1229
        %v1356 = vtanh.pop %v1231
        %v1357 = vtanh.pop %v1234
        %v1358 = vtanh.pop %v1236
        %v1359 = vtanh.pop %v1239
        %v1360 = vtanh.pop %v1241
        %v1361 = vtanh.pop %v1244
        %v1362 = vtanh.pop %v1246
        %v1363 = vtanh.pop %v1249
        %v1364 = vtanh.pop %v1251
        %v1365 = vtanh.pop %v1254
        %v1366 = vtanh.pop %v1256
        %v1367 = vtanh.pop %v1259
        %v1368 = vtanh.pop %v1261
        %v1369 = vtanh.pop %v1264
        %v1370 = vtanh.pop %v1266
        %v1371 = vtanh.pop %v1269
        %v1372 = vtanh.pop %v1271
        %v1373 = vtanh.pop %v1274
        %v1374 = vtanh.pop %v1276
        %v1375 = vtanh.pop %v1279
        %v1376 = vtanh.pop %v1281
        %v1377 = vtanh.pop %v1284
        %v1378 = vtanh.pop %v1286
        %v1379 = vtanh.pop %v1289
        %v1380 = vtanh.pop %v1291
        %v1381 = vtanh.pop %v1294
        %v1382 = vtanh.pop %v1296
        %v1383 = vtanh.pop %v1299
        %v1384 = vtanh.pop %v1301
        %v1385 = vtanh.pop %v1304
        %v1386 = vtanh.pop %v1306
        %v1387 = vtanh.pop %v1309
        %v1388 = vtanh.pop %v1311
        %v1389 = vtanh.pop %v1314
        %v1390 = vtanh.pop %v1316
        %v1391 = vtanh.pop %v1319
        %v1392 = vtanh.pop %v1321
        %v1393 = vtanh.pop %v1324
        %v1394 = vtanh.pop %v1326
        %v1395 = vtanh.pop %v1329
        %v1396 = vtanh.pop %v1331
        %1397 = vst [vmem:[%s164] sm:$0xff] %v1333
        %1398 = vst [vmem:[%s164 + $0x8] sm:$0xff] %v1334
        %1399 = vst [vmem:[%s164 + $0x10] sm:$0xff] %v1335
        %1400 = vst [vmem:[%s164 + $0x18] sm:$0xff] %v1336
        %1401 = vst [vmem:[%s164 + $0x20] sm:$0xff] %v1337
        %1402 = vst [vmem:[%s164 + $0x28] sm:$0xff] %v1338
        %1403 = vst [vmem:[%s164 + $0x30] sm:$0xff] %v1339
        %1404 = vst [vmem:[%s164 + $0x38] sm:$0xff] %v1340
        %1405 = vst [vmem:[%s164 + $0x40] sm:$0xff] %v1341
        %1406 = vst [vmem:[%s164 + $0x48] sm:$0xff] %v1342
        %1407 = vst [vmem:[%s164 + $0x50] sm:$0xff] %v1343
        %1408 = vst [vmem:[%s164 + $0x58] sm:$0xff] %v1344
        %1409 = vst [vmem:[%s164 + $0x60] sm:$0xff] %v1345
        %1410 = vst [vmem:[%s164 + $0x68] sm:$0xff] %v1346
        %1411 = vst [vmem:[%s164 + $0x70] sm:$0xff] %v1347
        %1412 = vst [vmem:[%s164 + $0x78] sm:$0xff] %v1348
        %1413 = vst [vmem:[%s164 + $0x80] sm:$0xff] %v1349
        %1414 = vst [vmem:[%s164 + $0x88] sm:$0xff] %v1350
        %1415 = vst [vmem:[%s164 + $0x90] sm:$0xff] %v1351
        %1416 = vst [vmem:[%s164 + $0x98] sm:$0xff] %v1352
        %1417 = vst [vmem:[%s164 + $0xa0] sm:$0xff] %v1353
        %1418 = vst [vmem:[%s164 + $0xa8] sm:$0xff] %v1354
        %1419 = vst [vmem:[%s164 + $0xb0] sm:$0xff] %v1355
        %1420 = vst [vmem:[%s164 + $0xb8] sm:$0xff] %v1356
        %1421 = vst [vmem:[%s164 + $0xc0] sm:$0xff] %v1357
        %1422 = vst [vmem:[%s164 + $0xc8] sm:$0xff] %v1358
        %1423 = vst [vmem:[%s164 + $0xd0] sm:$0xff] %v1359
        %1424 = vst [vmem:[%s164 + $0xd8] sm:$0xff] %v1360
        %1425 = vst [vmem:[%s164 + $0xe0] sm:$0xff] %v1361
        %1426 = vst [vmem:[%s164 + $0xe8] sm:$0xff] %v1362
        %1427 = vst [vmem:[%s164 + $0xf0] sm:$0xff] %v1363
        %1428 = vst [vmem:[%s164 + $0xf8] sm:$0xff] %v1364
        %1429 = vst [vmem:[%s164 + $0x100] sm:$0xff] %v1365
        %1430 = vst [vmem:[%s164 + $0x108] sm:$0xff] %v1366
        %1431 = vst [vmem:[%s164 + $0x110] sm:$0xff] %v1367
        %1432 = vst [vmem:[%s164 + $0x118] sm:$0xff] %v1368
        %1433 = vst [vmem:[%s164 + $0x120] sm:$0xff] %v1369
        %1434 = vst [vmem:[%s164 + $0x128] sm:$0xff] %v1370
        %1435 = vst [vmem:[%s164 + $0x130] sm:$0xff] %v1371
        %1436 = vst [vmem:[%s164 + $0x138] sm:$0xff] %v1372
        %1437 = vst [vmem:[%s164 + $0x140] sm:$0xff] %v1373
        %1438 = vst [vmem:[%s164 + $0x148] sm:$0xff] %v1374
        %1439 = vst [vmem:[%s164 + $0x150] sm:$0xff] %v1375
        %1440 = vst [vmem:[%s164 + $0x158] sm:$0xff] %v1376
        %1441 = vst [vmem:[%s164 + $0x160] sm:$0xff] %v1377
        %1442 = vst [vmem:[%s164 + $0x168] sm:$0xff] %v1378
        %1443 = vst [vmem:[%s164 + $0x170] sm:$0xff] %v1379
        %1444 = vst [vmem:[%s164 + $0x178] sm:$0xff] %v1380
        %1445 = vst [vmem:[%s164 + $0x180] sm:$0xff] %v1381
        %1446 = vst [vmem:[%s164 + $0x188] sm:$0xff] %v1382
        %1447 = vst [vmem:[%s164 + $0x190] sm:$0xff] %v1383
        %1448 = vst [vmem:[%s164 + $0x198] sm:$0xff] %v1384
        %1449 = vst [vmem:[%s164 + $0x1a0] sm:$0xff] %v1385
        %1450 = vst [vmem:[%s164 + $0x1a8] sm:$0xff] %v1386
        %1451 = vst [vmem:[%s164 + $0x1b0] sm:$0xff] %v1387
        %1452 = vst [vmem:[%s164 + $0x1b8] sm:$0xff] %v1388
        %1453 = vst [vmem:[%s164 + $0x1c0] sm:$0xff] %v1389
        %1454 = vst [vmem:[%s164 + $0x1c8] sm:$0xff] %v1390
        %1455 = vst [vmem:[%s164 + $0x1d0] sm:$0xff] %v1391
        %1456 = vst [vmem:[%s164 + $0x1d8] sm:$0xff] %v1392
        %1457 = vst [vmem:[%s164 + $0x1e0] sm:$0xff] %v1393
        %1458 = vst [vmem:[%s164 + $0x1e8] sm:$0xff] %v1394
        %1459 = vst [vmem:[%s164 + $0x1f0] sm:$0xff] %v1395
        %1460 = vst [vmem:[%s164 + $0x1f8] sm:$0xff] %v1396
        %s1461 = sand.u32 %s93, 1
        %s1462 = scalar_lea.sflag [#allocation3], %s1461
        %s1463 = sand.u32 %s93, 1
        %s1464 = smul.addr %s1463, 512
        %s1465 = scalar_lea.vmem [#allocation2], %s1464
        // Predicated region
        $region33: #{tpu_custom_call.1} parent=31 // pred_check
          %p1466 = pneg %p103
        $region34: #{tpu_custom_call.1} parent=31 // pred_check_branch
          %1468 = sbr.rel (%p1466) target = $region36
        $region35: #{tpu_custom_call.1} parent=31 // pred_region
          %s1469 = smul.u32 64, %s17
          %1471 = vsyncadd %s1462, 0
          %s1472 = smul.addr %s1469, 8
          %s1473 = scalar_lea.hbm %s3, %s1472
          %s1474 = sshll.u32 %s1465, 4
          %s1475 = int_to_ptr.vmem [resolvable:$true] %s1474
          %s1476 = sshll.u32 %s1473, 4
          %s1477 = int_to_ptr.hbm [resolvable:$true] %s1476
          %1482 = dma.vmem_to_hbm [thread:$0]  %s1475, 8192, %s1477, %s1462, 128, 128, 8
        $region36: #{tpu_custom_call.1} parent=31 // pred_fallthru
          _
      $region32: #{tpu_custom_call.1} parent=5 // pred_fallthru
        _
      %p1483 = scmp.le.s32.totalorder 2, %s12
      // Predicated region
      $region37: #{tpu_custom_call.1} parent=5 // pred_check
        %p1484 = pneg %p1483
      $region38: #{tpu_custom_call.1} parent=5 // pred_check_branch
        %1486 = sbr.rel (%p1484) target = $region40
      $region39: #{tpu_custom_call.1} parent=5 // pred_region
        %s1487 = ssub.s32 %s12, 2
        // Predicated region
        $region41: #{tpu_custom_call.1} parent=39 // pred_check
          %p1488 = pneg %p109
        $region42: #{tpu_custom_call.1} parent=39 // pred_check_branch
          %1490 = sbr.rel (%p1488) target = $region44
        $region43: #{tpu_custom_call.1} parent=39 // pred_region
          %s1491 = sand.u32 %s94, 1
          %s1492 = scalar_lea.sflag [#allocation3], %s1491
          %s1493 = sand.u32 %s94, 1
          %s1494 = smul.addr %s1493, 512
          %s1495 = scalar_lea.vmem [#allocation2], %s1494
          %1497 = dma.done %s1492, 8192
        $region44: #{tpu_custom_call.1} parent=39 // pred_fallthru
          _
      $region40: #{tpu_custom_call.1} parent=5 // pred_fallthru
        _
    $region6: #{tpu_custom_call.1} parent=1 // loop_footer
      %s16 = sadd.s32 1, %s12
    $region7: #{tpu_custom_call.1} parent=1 // loop_footer_branch
      %11 = sbr.rel target = $region3
    $region8: #{tpu_custom_call.1} parent=1 // loop_exit
      _
    %1498 = vsyncpa [#allocation3], 1
    %s1499 = scalar_lea.sflag [#allocation3], 1
    %1500 = vsyncpa %s1499, 1

</llo_original>
